<compile_context>
chip_gen: v7x
topology: tpu7x:2x2x1
jax: 0.10.0
libtpu: 0.0.40
codegen_flags: <defaults>
</compile_context>

<pallas_src>
import functools

import jax
import jax.numpy as jnp
from jax.experimental import pallas as pl
from jax.experimental.pallas import tpu as pltpu


# 3x3 tap offsets in (dy, dx) row-major order (matches HWIO weight flattening).
_TAPS = tuple((dy, dx) for dy in (-1, 0, 1) for dx in (-1, 0, 1))
_SUBLANE_PAD = 16   # bf16 sublane tile height -> sublane-aligned im2col slabs


# ------------------------------- fused kernel ------------------------------- #

def _fused_unified_bev_kernel(x_ref, mask_ref, w1_ref, b1_ref, w2_ref, b2_ref,
                              fw_ref, fb_ref, o_ref, *, W):
    # x_ref   : (1, Cinp, L)    bf16  concatenated + channel-padded granularity inputs
    # mask_ref: (9, L)          bf16  per-tap SAME-padding validity masks (per image)
    # w1_ref  : (Co1p, 9*Cinp)  bf16  block-diagonal conv1 weights (BN scale folded)
    # b1_ref  : (Co1p, 1)       f32   folded BN bias
    # w2_ref  : (Co2p, 9*Co1p)  bf16  block-diagonal conv2 weights
    # b2_ref  : (Co2p, 1)       f32
    # fw_ref  : (Cup, Co2p)     bf16  1x1 fusion conv weights
    # fb_ref  : (Cup, 1)        f32
    # o_ref   : (1, Cup, L)     f32
    mask_rows = [mask_ref[t:t + 1, :] for t in range(9)]       # each (1, L) bf16

    def conv3x3_bn_relu(x, w_ref, b_ref):
        # x: (C, L) bf16.  One MXU matmul per layer: (Cout, 9*C) @ (9*C, L).
        cols = []
        for t, (dy, dx) in enumerate(_TAPS):
            d = dy * W + dx
            if d == 0:
                cols.append(x)                                  # center tap: always valid
            else:
                # Static-shift roll (lane slices + concat); out-of-image wrap is zeroed by
                # the host-precomputed mask, which also zeroes cross-image wrap when the
                # batch is folded into the lane axis.
                shifted = jnp.roll(x, -d, axis=1)
                cols.append(shifted * mask_rows[t])             # bf16 * bf16, no promotion
        im2col = jnp.concatenate(cols, axis=0)                  # (9*C, L) bf16, sublane-aligned
        y = jnp.dot(w_ref[...], im2col, preferred_element_type=jnp.float32)
        y = jnp.maximum(y + b_ref[...], 0.0)                    # f32 epilogue (bias + ReLU)
        return y.astype(jnp.bfloat16)

    h = conv3x3_bn_relu(x_ref[0], w1_ref, b1_ref)               # (Co1p, L)
    h = conv3x3_bn_relu(h, w2_ref, b2_ref)                      # (Co2p, L) == concat(f1,f2,f3)
    out = jnp.dot(fw_ref[...], h, preferred_element_type=jnp.float32) + fb_ref[...]
    o_ref[...] = out[None, :, :].astype(o_ref.dtype)


# ------------------------------ host-side folding ---------------------------- #

def _round_up(x, m):
    return (x + m - 1) // m * m


def _block_diag_conv_weights(ws_hwio, scales, biases, cin_pad, cout_pad):
    """Fold BN and merge per-branch 3x3 convs into one block-diagonal matmul weight.

    Returns ((cout_pad, 9*cin_pad) f32, (cout_pad, 1) f32); column order is (tap, channel)
    to match the kernel's im2col layout.
    """
    tap_blocks = []
    for dy_i in range(3):
        for dx_i in range(3):
            blk = jnp.zeros((cout_pad, cin_pad), jnp.float32)
            ro, co = 0, 0
            for w, s in zip(ws_hwio, scales):
                ci, cu = w.shape[2], w.shape[3]
                m = jnp.transpose(w[dy_i, dx_i], (1, 0)) * s[:, None]   # (cout_b, cin_b)
                blk = blk.at[ro:ro + cu, co:co + ci].set(m)
                ro += cu
                co += ci
            tap_blocks.append(blk)
    wmat = jnp.concatenate(tap_blocks, axis=1)                  # (cout_pad, 9*cin_pad)
    cout_tot = sum(w.shape[3] for w in ws_hwio)
    bias = jnp.zeros((cout_pad,), jnp.float32).at[:cout_tot].set(jnp.concatenate(biases))
    return wmat, bias.reshape(-1, 1)


def _tap_masks(H, W, images_per_block, dtype=jnp.bfloat16):
    """(9, images_per_block*H*W) per-tap validity masks implementing SAME zero padding."""
    yy = jnp.arange(H * W, dtype=jnp.int32) // W
    xx = jnp.arange(H * W, dtype=jnp.int32) % W
    rows = []
    for dy, dx in _TAPS:
        rows.append((yy + dy >= 0) & (yy + dy < H) & (xx + dx >= 0) & (xx + dx < W))
    mask = jnp.stack(rows, axis=0).astype(dtype)                # (9, H*W)
    return jnp.tile(mask, (1, images_per_block))                # (9, NB*H*W)


def _pick_images_per_block(n):
    # Fold several images into the lane axis (amortize per-step overhead, widen the MXU
    # result dim) while still leaving >=2 parallel grid steps for the second v7x core.
    if n <= 2:
        return 1
    for nb in (8, 4, 2):
        if n % nb == 0 and n // nb >= 2:
            return nb
    return 1


def unified_bev_encoder(g1_nchw, g2_nchw, g3_nchw, params, *, images_per_block=None):
    """Inputs/outputs in NCHW (PyTorch convention). Single fused Pallas kernel."""
    N, C1, H, W = g1_nchw.shape
    C2, C3 = g2_nchw.shape[1], g3_nchw.shape[1]
    HW = H * W

    NB = _pick_images_per_block(N) if images_per_block is None else images_per_block
    assert N % NB == 0, (N, NB)
    G = N // NB
    L = NB * HW

    p1, p2, p3 = params["g1"], params["g2"], params["g3"]
    O1, O2, O3 = p1["w1"].shape[3], p2["w1"].shape[3], p3["w1"].shape[3]
    cin_tot = C1 + C2 + C3
    cout_tot = O1 + O2 + O3
    cin_pad = _round_up(cin_tot, _SUBLANE_PAD)
    cout_pad = _round_up(cout_tot, _SUBLANE_PAD)
    cu = params["fw"].shape[0]
    cu_pad = _round_up(cu, 8)

    # Host-side: BN fold + block-diagonal branch merge + bf16 cast of MXU operands.
    w1, b1 = _block_diag_conv_weights(
        [p1["w1"], p2["w1"], p3["w1"]], [p1["s1"], p2["s1"], p3["s1"]],
        [p1["b1"], p2["b1"], p3["b1"]], cin_pad, cout_pad)
    w2, b2 = _block_diag_conv_weights(
        [p1["w2"], p2["w2"], p3["w2"]], [p1["s2"], p2["s2"], p3["s2"]],
        [p1["b2"], p2["b2"], p3["b2"]], cout_pad, cout_pad)
    fw = jnp.zeros((cu_pad, cout_pad), jnp.float32).at[:cu, :cout_tot].set(params["fw"])
    fb = jnp.zeros((cu_pad, 1), jnp.float32).at[:cu, 0].set(params["fb"])
    w1 = w1.astype(jnp.bfloat16)
    w2 = w2.astype(jnp.bfloat16)
    fw = fw.astype(jnp.bfloat16)

    # Input: channel concat + zero-pad, fold NB images into the lane axis, cast to bf16.
    x = jnp.concatenate([g1_nchw, g2_nchw, g3_nchw], axis=1)    # (N, cin_tot, H, W)
    x = jnp.pad(x, ((0, 0), (0, cin_pad - cin_tot), (0, 0), (0, 0)))
    x = x.reshape(N, cin_pad, HW)
    x = x.reshape(G, NB, cin_pad, HW).transpose(0, 2, 1, 3).reshape(G, cin_pad, L)
    x = x.astype(jnp.bfloat16)

    mask = _tap_masks(H, W, NB)

    flops = 2 * N * HW * (cout_pad * 9 * cin_pad + cout_pad * 9 * cout_pad + cu_pad * cout_pad)
    bytes_accessed = (x.size * 2 + G * cu_pad * L * 4 + mask.size * 2 +
                      (w1.size + w2.size + fw.size) * 2 + (b1.size + b2.size + fb.size) * 4)

    def full_spec(arr):
        return pl.BlockSpec(arr.shape, lambda g: (0,) * arr.ndim)

    out = pl.pallas_call(
        functools.partial(_fused_unified_bev_kernel, W=W),
        out_shape=jax.ShapeDtypeStruct((G, cu_pad, L), jnp.float32),
        grid=(G,),
        in_specs=[pl.BlockSpec((1, cin_pad, L), lambda g: (g, 0, 0)),
                  full_spec(mask), full_spec(w1), full_spec(b1),
                  full_spec(w2), full_spec(b2), full_spec(fw), full_spec(fb)],
        out_specs=pl.BlockSpec((1, cu_pad, L), lambda g: (g, 0, 0)),
        compiler_params=pltpu.CompilerParams(dimension_semantics=("parallel",)),
        cost_estimate=pl.CostEstimate(flops=int(flops), transcendentals=0,
                                      bytes_accessed=int(bytes_accessed)),
    )(x, mask, w1, b1, w2, b2, fw, fb)

    # Unfold lanes back to NCHW and drop channel padding (free / tiny host-side ops).
    out = out.reshape(G, cu_pad, NB, HW).transpose(0, 2, 1, 3).reshape(N, cu_pad, H, W)
    return out[:, :cu]


# ------------------------------ parameter setup ------------------------------ #

def _bn_affine(c, off):
    """Deterministic eval-mode BatchNorm params folded to (scale, bias)."""
    idx = jnp.arange(c, dtype=jnp.float32)
    gamma = 1.0 + 0.1 * idx / max(c, 1)
    beta = 0.05 * (idx - off)
    running_mean = 0.01 * idx
    running_var = 1.0 + 0.02 * idx
    scale = gamma * jax.lax.rsqrt(running_var + 1e-5)
    bias = beta - running_mean * scale
    return scale, bias


def make_granularity_params(key, cin, cout):
    k1, k2 = jax.random.split(key)
    w1 = 0.1 * jax.random.normal(k1, (3, 3, cin, cout), jnp.float32)   # HWIO
    w2 = 0.1 * jax.random.normal(k2, (3, 3, cout, cout), jnp.float32)  # HWIO
    s1, b1 = _bn_affine(cout, 0.0)
    s2, b2 = _bn_affine(cout, 1.0)
    return dict(w1=w1, s1=s1, b1=b1, w2=w2, s2=s2, b2=b2)


def make_unified_params(key, g1_c, g2_c, g3_c, g1_o, g2_o, g3_o, unified_c):
    k1, k2, k3, k4 = jax.random.split(key, 4)
    total = g1_o + g2_o + g3_o
    return dict(
        g1=make_granularity_params(k1, g1_c, g1_o),
        g2=make_granularity_params(k2, g2_c, g2_o),
        g3=make_granularity_params(k3, g3_c, g3_o),
        fw=0.1 * jax.random.normal(k4, (unified_c, total), jnp.float32),  # (Cout, Cin)
        fb=0.02 * jnp.arange(unified_c, dtype=jnp.float32),
    )


# ------------------------------ pure-JAX reference --------------------------- #

def _ref_conv3x3_bn_relu_nchw(x, w_hwio, scale, bias):
    y = jax.lax.conv_general_dilated(
        x, w_hwio, window_strides=(1, 1), padding="SAME",
        dimension_numbers=("NCHW", "HWIO", "NCHW"))
    y = y * scale[None, :, None, None] + bias[None, :, None, None]
    return jnp.maximum(y, 0.0)


def _ref_unified(g1, g2, g3, params):
    feats = []
    for x, p in ((g1, params["g1"]), (g2, params["g2"]), (g3, params["g3"])):
        h = _ref_conv3x3_bn_relu_nchw(x, p["w1"], p["s1"], p["b1"])
        feats.append(_ref_conv3x3_bn_relu_nchw(h, p["w2"], p["s2"], p["b2"]))
    cat = jnp.concatenate(feats, axis=1)
    out = jnp.einsum("nchw,oc->nohw", cat, params["fw"])
    return out + params["fb"][None, :, None, None]


# ----------------------------------- main ------------------------------------ #

if __name__ == "__main__":
    key = jax.random.PRNGKey(0)
    k_params, k1, k2, k3 = jax.random.split(key, 4)

    N, H, W = 2, 16, 16
    g1_c, g2_c, g3_c = 4, 3, 5
    g1_o, g2_o, g3_o = 8, 6, 10
    unified_c = 16

    params = make_unified_params(k_params, g1_c, g2_c, g3_c, g1_o, g2_o, g3_o, unified_c)

    g1_data = jax.random.normal(k1, (N, g1_c, H, W), jnp.float32)   # NCHW, as in PyTorch
    g2_data = jax.random.normal(k2, (N, g2_c, H, W), jnp.float32)
    g3_data = jax.random.normal(k3, (N, g3_c, H, W), jnp.float32)

    out = unified_bev_encoder(g1_data, g2_data, g3_data, params)
    out = jax.block_until_ready(out)

    ref = jax.block_until_ready(_ref_unified(g1_data, g2_data, g3_data, params))
    assert out.shape == (N, unified_c, H, W), out.shape
    # bf16 MXU operands (f32 accumulation) vs. a pure-f32 reference -> looser tolerance.
    err = float(jnp.max(jnp.abs(out - ref)))
    tol = 5e-2 * float(jnp.max(jnp.abs(ref))) + 1e-2
    assert err <= tol, (err, tol)

    print("KERNEL_OK")
</pallas_src>

<mosaic_0001>
module attributes {stable_mosaic.version = 11 : i64} {
  func.func @_fused_unified_bev_kernel(%arg0: i32, %arg1: memref<1x16x256xbf16, #tpu.memory_space<vmem>>, %arg2: memref<9x256xbf16, #tpu.memory_space<vmem>>, %arg3: memref<32x144xbf16, #tpu.memory_space<vmem>>, %arg4: memref<32x1xf32, #tpu.memory_space<vmem>>, %arg5: memref<32x288xbf16, #tpu.memory_space<vmem>>, %arg6: memref<32x1xf32, #tpu.memory_space<vmem>>, %arg7: memref<16x32xbf16, #tpu.memory_space<vmem>>, %arg8: memref<16x1xf32, #tpu.memory_space<vmem>>, %arg9: memref<1x16x256xf32, #tpu.memory_space<vmem>>) attributes {dimension_semantics = [#tpu.dimension_semantics<parallel>], iteration_bounds = array<i64: 2>, scalar_prefetch = 0 : i64, scratch_operands = 0 : i64, tpu.core_type = #tpu.core_type<tc>, window_params = [{transform_indices = @transform_0, window_bounds = array<i64: 1, 16, 256>}, {pipeline_mode = #tpu.pipeline_mode<synchronous>, transform_indices = @transform_1, window_bounds = array<i64: 9, 256>}, {pipeline_mode = #tpu.pipeline_mode<synchronous>, transform_indices = @transform_2, window_bounds = array<i64: 32, 144>}, {pipeline_mode = #tpu.pipeline_mode<synchronous>, transform_indices = @transform_3, window_bounds = array<i64: 32, 1>}, {pipeline_mode = #tpu.pipeline_mode<synchronous>, transform_indices = @transform_4, window_bounds = array<i64: 32, 288>}, {pipeline_mode = #tpu.pipeline_mode<synchronous>, transform_indices = @transform_5, window_bounds = array<i64: 32, 1>}, {pipeline_mode = #tpu.pipeline_mode<synchronous>, transform_indices = @transform_6, window_bounds = array<i64: 16, 32>}, {pipeline_mode = #tpu.pipeline_mode<synchronous>, transform_indices = @transform_7, window_bounds = array<i64: 16, 1>}, {transform_indices = @transform_8, window_bounds = array<i64: 1, 16, 256>}]} {
    %c0 = arith.constant 0 : index
    %c0_0 = arith.constant 0 : index
    %0 = vector.load %arg2[%c0, %c0_0] : memref<9x256xbf16, #tpu.memory_space<vmem>>, vector<1x256xbf16>
    %c1 = arith.constant 1 : index
    %c0_1 = arith.constant 0 : index
    %1 = vector.load %arg2[%c1, %c0_1] : memref<9x256xbf16, #tpu.memory_space<vmem>>, vector<1x256xbf16>
    %c2 = arith.constant 2 : index
    %c0_2 = arith.constant 0 : index
    %2 = vector.load %arg2[%c2, %c0_2] : memref<9x256xbf16, #tpu.memory_space<vmem>>, vector<1x256xbf16>
    %c3 = arith.constant 3 : index
    %c0_3 = arith.constant 0 : index
    %3 = vector.load %arg2[%c3, %c0_3] : memref<9x256xbf16, #tpu.memory_space<vmem>>, vector<1x256xbf16>
    %c5 = arith.constant 5 : index
    %c0_4 = arith.constant 0 : index
    %4 = vector.load %arg2[%c5, %c0_4] : memref<9x256xbf16, #tpu.memory_space<vmem>>, vector<1x256xbf16>
    %c6 = arith.constant 6 : index
    %c0_5 = arith.constant 0 : index
    %5 = vector.load %arg2[%c6, %c0_5] : memref<9x256xbf16, #tpu.memory_space<vmem>>, vector<1x256xbf16>
    %c7 = arith.constant 7 : index
    %c0_6 = arith.constant 0 : index
    %6 = vector.load %arg2[%c7, %c0_6] : memref<9x256xbf16, #tpu.memory_space<vmem>>, vector<1x256xbf16>
    %c8 = arith.constant 8 : index
    %c0_7 = arith.constant 0 : index
    %7 = vector.load %arg2[%c8, %c0_7] : memref<9x256xbf16, #tpu.memory_space<vmem>>, vector<1x256xbf16>
    %c0_8 = arith.constant 0 : index
    %c0_9 = arith.constant 0 : index
    %c0_10 = arith.constant 0 : index
    %8 = vector.load %arg1[%c0_8, %c0_9, %c0_10] : memref<1x16x256xbf16, #tpu.memory_space<vmem>>, vector<1x16x256xbf16>
    %9 = vector.shape_cast %8 : vector<1x16x256xbf16> to vector<16x256xbf16>
    %10 = vector.extract_strided_slice %9 {offsets = [0, 239], sizes = [16, 17], strides = [1, 1]} : vector<16x256xbf16> to vector<16x17xbf16>
    %11 = vector.extract_strided_slice %9 {offsets = [0, 0], sizes = [16, 239], strides = [1, 1]} : vector<16x256xbf16> to vector<16x239xbf16>
    %12 = tpu.concatenate %10, %11 in 1 : vector<16x17xbf16>, vector<16x239xbf16> -> vector<16x256xbf16>
    %13 = vector.broadcast %0 : vector<1x256xbf16> to vector<16x256xbf16>
    %14 = arith.mulf %12, %13 : vector<16x256xbf16>
    %15 = vector.extract_strided_slice %9 {offsets = [0, 240], sizes = [16, 16], strides = [1, 1]} : vector<16x256xbf16> to vector<16x16xbf16>
    %16 = vector.extract_strided_slice %9 {offsets = [0, 0], sizes = [16, 240], strides = [1, 1]} : vector<16x256xbf16> to vector<16x240xbf16>
    %17 = tpu.concatenate %15, %16 in 1 : vector<16x16xbf16>, vector<16x240xbf16> -> vector<16x256xbf16>
    %18 = vector.broadcast %1 : vector<1x256xbf16> to vector<16x256xbf16>
    %19 = arith.mulf %17, %18 : vector<16x256xbf16>
    %20 = vector.extract_strided_slice %9 {offsets = [0, 241], sizes = [16, 15], strides = [1, 1]} : vector<16x256xbf16> to vector<16x15xbf16>
    %21 = vector.extract_strided_slice %9 {offsets = [0, 0], sizes = [16, 241], strides = [1, 1]} : vector<16x256xbf16> to vector<16x241xbf16>
    %22 = tpu.concatenate %20, %21 in 1 : vector<16x15xbf16>, vector<16x241xbf16> -> vector<16x256xbf16>
    %23 = vector.broadcast %2 : vector<1x256xbf16> to vector<16x256xbf16>
    %24 = arith.mulf %22, %23 : vector<16x256xbf16>
    %25 = vector.extract_strided_slice %9 {offsets = [0, 255], sizes = [16, 1], strides = [1, 1]} : vector<16x256xbf16> to vector<16x1xbf16>
    %26 = vector.extract_strided_slice %9 {offsets = [0, 0], sizes = [16, 255], strides = [1, 1]} : vector<16x256xbf16> to vector<16x255xbf16>
    %27 = tpu.concatenate %25, %26 in 1 : vector<16x1xbf16>, vector<16x255xbf16> -> vector<16x256xbf16>
    %28 = vector.broadcast %3 : vector<1x256xbf16> to vector<16x256xbf16>
    %29 = arith.mulf %27, %28 : vector<16x256xbf16>
    %30 = vector.extract_strided_slice %9 {offsets = [0, 1], sizes = [16, 255], strides = [1, 1]} : vector<16x256xbf16> to vector<16x255xbf16>
    %31 = vector.extract_strided_slice %9 {offsets = [0, 0], sizes = [16, 1], strides = [1, 1]} : vector<16x256xbf16> to vector<16x1xbf16>
    %32 = tpu.concatenate %30, %31 in 1 : vector<16x255xbf16>, vector<16x1xbf16> -> vector<16x256xbf16>
    %33 = vector.broadcast %4 : vector<1x256xbf16> to vector<16x256xbf16>
    %34 = arith.mulf %32, %33 : vector<16x256xbf16>
    %35 = vector.extract_strided_slice %9 {offsets = [0, 15], sizes = [16, 241], strides = [1, 1]} : vector<16x256xbf16> to vector<16x241xbf16>
    %36 = vector.extract_strided_slice %9 {offsets = [0, 0], sizes = [16, 15], strides = [1, 1]} : vector<16x256xbf16> to vector<16x15xbf16>
    %37 = tpu.concatenate %35, %36 in 1 : vector<16x241xbf16>, vector<16x15xbf16> -> vector<16x256xbf16>
    %38 = vector.broadcast %5 : vector<1x256xbf16> to vector<16x256xbf16>
    %39 = arith.mulf %37, %38 : vector<16x256xbf16>
    %40 = vector.extract_strided_slice %9 {offsets = [0, 16], sizes = [16, 240], strides = [1, 1]} : vector<16x256xbf16> to vector<16x240xbf16>
    %41 = vector.extract_strided_slice %9 {offsets = [0, 0], sizes = [16, 16], strides = [1, 1]} : vector<16x256xbf16> to vector<16x16xbf16>
    %42 = tpu.concatenate %40, %41 in 1 : vector<16x240xbf16>, vector<16x16xbf16> -> vector<16x256xbf16>
    %43 = vector.broadcast %6 : vector<1x256xbf16> to vector<16x256xbf16>
    %44 = arith.mulf %42, %43 : vector<16x256xbf16>
    %45 = vector.extract_strided_slice %9 {offsets = [0, 17], sizes = [16, 239], strides = [1, 1]} : vector<16x256xbf16> to vector<16x239xbf16>
    %46 = vector.extract_strided_slice %9 {offsets = [0, 0], sizes = [16, 17], strides = [1, 1]} : vector<16x256xbf16> to vector<16x17xbf16>
    %47 = tpu.concatenate %45, %46 in 1 : vector<16x239xbf16>, vector<16x17xbf16> -> vector<16x256xbf16>
    %48 = vector.broadcast %7 : vector<1x256xbf16> to vector<16x256xbf16>
    %49 = arith.mulf %47, %48 : vector<16x256xbf16>
    %50 = tpu.concatenate %14, %19, %24, %29, %9, %34, %39, %44, %49 in 0 : vector<16x256xbf16>, vector<16x256xbf16>, vector<16x256xbf16>, vector<16x256xbf16>, vector<16x256xbf16>, vector<16x256xbf16>, vector<16x256xbf16>, vector<16x256xbf16>, vector<16x256xbf16> -> vector<144x256xbf16>
    %c0_11 = arith.constant 0 : index
    %c0_12 = arith.constant 0 : index
    %51 = vector.load %arg3[%c0_11, %c0_12] : memref<32x144xbf16, #tpu.memory_space<vmem>>, vector<32x144xbf16>
    %cst = arith.constant dense<0.000000e+00> : vector<32x256xf32>
    %52 = tpu.matmul %51, %50, %cst {dimension_numbers = #tpu.dot_dimension_numbers<[1], [0], [0], [1], [0, 0, 1, 1], [], []>} : vector<32x144xbf16>, vector<144x256xbf16>, vector<32x256xf32> -> vector<32x256xf32>
    %c0_13 = arith.constant 0 : index
    %c0_14 = arith.constant 0 : index
    %53 = vector.load %arg4[%c0_13, %c0_14] : memref<32x1xf32, #tpu.memory_space<vmem>>, vector<32x1xf32>
    %54 = vector.broadcast %53 : vector<32x1xf32> to vector<32x256xf32>
    %55 = arith.addf %52, %54 : vector<32x256xf32>
    %cst_15 = arith.constant 0.000000e+00 : f32
    %56 = vector.broadcast %cst_15 : f32 to vector<32x256xf32>
    %57 = arith.maximumf %55, %56 : vector<32x256xf32>
    %58 = arith.truncf %57 : vector<32x256xf32> to vector<32x256xbf16>
    %59 = vector.extract_strided_slice %58 {offsets = [0, 239], sizes = [32, 17], strides = [1, 1]} : vector<32x256xbf16> to vector<32x17xbf16>
    %60 = vector.extract_strided_slice %58 {offsets = [0, 0], sizes = [32, 239], strides = [1, 1]} : vector<32x256xbf16> to vector<32x239xbf16>
    %61 = tpu.concatenate %59, %60 in 1 : vector<32x17xbf16>, vector<32x239xbf16> -> vector<32x256xbf16>
    %62 = vector.broadcast %0 : vector<1x256xbf16> to vector<32x256xbf16>
    %63 = arith.mulf %61, %62 : vector<32x256xbf16>
    %64 = vector.extract_strided_slice %58 {offsets = [0, 240], sizes = [32, 16], strides = [1, 1]} : vector<32x256xbf16> to vector<32x16xbf16>
    %65 = vector.extract_strided_slice %58 {offsets = [0, 0], sizes = [32, 240], strides = [1, 1]} : vector<32x256xbf16> to vector<32x240xbf16>
    %66 = tpu.concatenate %64, %65 in 1 : vector<32x16xbf16>, vector<32x240xbf16> -> vector<32x256xbf16>
    %67 = vector.broadcast %1 : vector<1x256xbf16> to vector<32x256xbf16>
    %68 = arith.mulf %66, %67 : vector<32x256xbf16>
    %69 = vector.extract_strided_slice %58 {offsets = [0, 241], sizes = [32, 15], strides = [1, 1]} : vector<32x256xbf16> to vector<32x15xbf16>
    %70 = vector.extract_strided_slice %58 {offsets = [0, 0], sizes = [32, 241], strides = [1, 1]} : vector<32x256xbf16> to vector<32x241xbf16>
    %71 = tpu.concatenate %69, %70 in 1 : vector<32x15xbf16>, vector<32x241xbf16> -> vector<32x256xbf16>
    %72 = vector.broadcast %2 : vector<1x256xbf16> to vector<32x256xbf16>
    %73 = arith.mulf %71, %72 : vector<32x256xbf16>
    %74 = vector.extract_strided_slice %58 {offsets = [0, 255], sizes = [32, 1], strides = [1, 1]} : vector<32x256xbf16> to vector<32x1xbf16>
    %75 = vector.extract_strided_slice %58 {offsets = [0, 0], sizes = [32, 255], strides = [1, 1]} : vector<32x256xbf16> to vector<32x255xbf16>
    %76 = tpu.concatenate %74, %75 in 1 : vector<32x1xbf16>, vector<32x255xbf16> -> vector<32x256xbf16>
    %77 = vector.broadcast %3 : vector<1x256xbf16> to vector<32x256xbf16>
    %78 = arith.mulf %76, %77 : vector<32x256xbf16>
    %79 = vector.extract_strided_slice %58 {offsets = [0, 1], sizes = [32, 255], strides = [1, 1]} : vector<32x256xbf16> to vector<32x255xbf16>
    %80 = vector.extract_strided_slice %58 {offsets = [0, 0], sizes = [32, 1], strides = [1, 1]} : vector<32x256xbf16> to vector<32x1xbf16>
    %81 = tpu.concatenate %79, %80 in 1 : vector<32x255xbf16>, vector<32x1xbf16> -> vector<32x256xbf16>
    %82 = vector.broadcast %4 : vector<1x256xbf16> to vector<32x256xbf16>
    %83 = arith.mulf %81, %82 : vector<32x256xbf16>
    %84 = vector.extract_strided_slice %58 {offsets = [0, 15], sizes = [32, 241], strides = [1, 1]} : vector<32x256xbf16> to vector<32x241xbf16>
    %85 = vector.extract_strided_slice %58 {offsets = [0, 0], sizes = [32, 15], strides = [1, 1]} : vector<32x256xbf16> to vector<32x15xbf16>
    %86 = tpu.concatenate %84, %85 in 1 : vector<32x241xbf16>, vector<32x15xbf16> -> vector<32x256xbf16>
    %87 = vector.broadcast %5 : vector<1x256xbf16> to vector<32x256xbf16>
    %88 = arith.mulf %86, %87 : vector<32x256xbf16>
    %89 = vector.extract_strided_slice %58 {offsets = [0, 16], sizes = [32, 240], strides = [1, 1]} : vector<32x256xbf16> to vector<32x240xbf16>
    %90 = vector.extract_strided_slice %58 {offsets = [0, 0], sizes = [32, 16], strides = [1, 1]} : vector<32x256xbf16> to vector<32x16xbf16>
    %91 = tpu.concatenate %89, %90 in 1 : vector<32x240xbf16>, vector<32x16xbf16> -> vector<32x256xbf16>
    %92 = vector.broadcast %6 : vector<1x256xbf16> to vector<32x256xbf16>
    %93 = arith.mulf %91, %92 : vector<32x256xbf16>
    %94 = vector.extract_strided_slice %58 {offsets = [0, 17], sizes = [32, 239], strides = [1, 1]} : vector<32x256xbf16> to vector<32x239xbf16>
    %95 = vector.extract_strided_slice %58 {offsets = [0, 0], sizes = [32, 17], strides = [1, 1]} : vector<32x256xbf16> to vector<32x17xbf16>
    %96 = tpu.concatenate %94, %95 in 1 : vector<32x239xbf16>, vector<32x17xbf16> -> vector<32x256xbf16>
    %97 = vector.broadcast %7 : vector<1x256xbf16> to vector<32x256xbf16>
    %98 = arith.mulf %96, %97 : vector<32x256xbf16>
    %99 = tpu.concatenate %63, %68, %73, %78, %58, %83, %88, %93, %98 in 0 : vector<32x256xbf16>, vector<32x256xbf16>, vector<32x256xbf16>, vector<32x256xbf16>, vector<32x256xbf16>, vector<32x256xbf16>, vector<32x256xbf16>, vector<32x256xbf16>, vector<32x256xbf16> -> vector<288x256xbf16>
    %c0_16 = arith.constant 0 : index
    %c0_17 = arith.constant 0 : index
    %100 = vector.load %arg5[%c0_16, %c0_17] : memref<32x288xbf16, #tpu.memory_space<vmem>>, vector<32x288xbf16>
    %cst_18 = arith.constant dense<0.000000e+00> : vector<32x256xf32>
    %101 = tpu.matmul %100, %99, %cst_18 {dimension_numbers = #tpu.dot_dimension_numbers<[1], [0], [0], [1], [0, 0, 1, 1], [], []>} : vector<32x288xbf16>, vector<288x256xbf16>, vector<32x256xf32> -> vector<32x256xf32>
    %c0_19 = arith.constant 0 : index
    %c0_20 = arith.constant 0 : index
    %102 = vector.load %arg6[%c0_19, %c0_20] : memref<32x1xf32, #tpu.memory_space<vmem>>, vector<32x1xf32>
    %103 = vector.broadcast %102 : vector<32x1xf32> to vector<32x256xf32>
    %104 = arith.addf %101, %103 : vector<32x256xf32>
    %cst_21 = arith.constant 0.000000e+00 : f32
    %105 = vector.broadcast %cst_21 : f32 to vector<32x256xf32>
    %106 = arith.maximumf %104, %105 : vector<32x256xf32>
    %107 = arith.truncf %106 : vector<32x256xf32> to vector<32x256xbf16>
    %c0_22 = arith.constant 0 : index
    %c0_23 = arith.constant 0 : index
    %108 = vector.load %arg7[%c0_22, %c0_23] : memref<16x32xbf16, #tpu.memory_space<vmem>>, vector<16x32xbf16>
    %cst_24 = arith.constant dense<0.000000e+00> : vector<16x256xf32>
    %109 = tpu.matmul %108, %107, %cst_24 {dimension_numbers = #tpu.dot_dimension_numbers<[1], [0], [0], [1], [0, 0, 1, 1], [], []>} : vector<16x32xbf16>, vector<32x256xbf16>, vector<16x256xf32> -> vector<16x256xf32>
    %c0_25 = arith.constant 0 : index
    %c0_26 = arith.constant 0 : index
    %110 = vector.load %arg8[%c0_25, %c0_26] : memref<16x1xf32, #tpu.memory_space<vmem>>, vector<16x1xf32>
    %111 = vector.broadcast %110 : vector<16x1xf32> to vector<16x256xf32>
    %112 = arith.addf %109, %111 : vector<16x256xf32>
    %113 = vector.shape_cast %112 : vector<16x256xf32> to vector<1x16x256xf32>
    %c0_27 = arith.constant 0 : index
    %c0_28 = arith.constant 0 : index
    %c0_29 = arith.constant 0 : index
    %114 = vector.load %arg9[%c0_27, %c0_28, %c0_29] : memref<1x16x256xf32, #tpu.memory_space<vmem>>, vector<1x16x256xf32>
    tpu.vector_store %arg9[%c0_27, %c0_28, %c0_29], %113 {strides = array<i32>} : memref<1x16x256xf32, #tpu.memory_space<vmem>>, vector<1x16x256xf32>,
    return
  }
  func.func @transform_0(%arg0: i32) -> (i32, i32, i32) {
    %c0_i32 = arith.constant 0 : i32
    %c0_i32_0 = arith.constant 0 : i32
    %c0_i32_1 = arith.constant 0 : i32
    return %arg0, %c0_i32, %c0_i32_0 : i32, i32, i32
  }
  func.func @transform_1(%arg0: i32) -> (i32, i32) {
    %c0_i32 = arith.constant 0 : i32
    %c0_i32_0 = arith.constant 0 : i32
    %c0_i32_1 = arith.constant 0 : i32
    return %c0_i32, %c0_i32_0 : i32, i32
  }
  func.func @transform_2(%arg0: i32) -> (i32, i32) {
    %c0_i32 = arith.constant 0 : i32
    %c0_i32_0 = arith.constant 0 : i32
    %c0_i32_1 = arith.constant 0 : i32
    return %c0_i32, %c0_i32_0 : i32, i32
  }
  func.func @transform_3(%arg0: i32) -> (i32, i32) {
    %c0_i32 = arith.constant 0 : i32
    %c0_i32_0 = arith.constant 0 : i32
    %c0_i32_1 = arith.constant 0 : i32
    return %c0_i32, %c0_i32_0 : i32, i32
  }
  func.func @transform_4(%arg0: i32) -> (i32, i32) {
    %c0_i32 = arith.constant 0 : i32
    %c0_i32_0 = arith.constant 0 : i32
    %c0_i32_1 = arith.constant 0 : i32
    return %c0_i32, %c0_i32_0 : i32, i32
  }
  func.func @transform_5(%arg0: i32) -> (i32, i32) {
    %c0_i32 = arith.constant 0 : i32
    %c0_i32_0 = arith.constant 0 : i32
    %c0_i32_1 = arith.constant 0 : i32
    return %c0_i32, %c0_i32_0 : i32, i32
  }
  func.func @transform_6(%arg0: i32) -> (i32, i32) {
    %c0_i32 = arith.constant 0 : i32
    %c0_i32_0 = arith.constant 0 : i32
    %c0_i32_1 = arith.constant 0 : i32
    return %c0_i32, %c0_i32_0 : i32, i32
  }
  func.func @transform_7(%arg0: i32) -> (i32, i32) {
    %c0_i32 = arith.constant 0 : i32
    %c0_i32_0 = arith.constant 0 : i32
    %c0_i32_1 = arith.constant 0 : i32
    return %c0_i32, %c0_i32_0 : i32, i32
  }
  func.func @transform_8(%arg0: i32) -> (i32, i32, i32) {
    %c0_i32 = arith.constant 0 : i32
    %c0_i32_0 = arith.constant 0 : i32
    %c0_i32_1 = arith.constant 0 : i32
    return %arg0, %c0_i32, %c0_i32_0 : i32, i32, i32
  }
}

</mosaic_0001>

<llo_original>
// kernel: tpu_custom_call.1
$region0: #{tpu_custom_call.1}
  #allocation0 [shape = 'u32[]', space=smem, size = 0x4, offset = 0x4, fixed_abs, tag = 'smem constant byte address 0x4 - core index']
  #allocation1 [shape = 'u32[144,128]{1,0:T(1,128)}', space=vmem, size = 0x12000, scoped, tag = 'internal scratch']
  %s0 = inlined_call_operand.vmem [shape: bf16[2,16,256], index: 0, kind: input, shape index: {}]
  %s1 = inlined_call_operand.hbm [shape: bf16[9,256], index: 1, kind: input, shape index: {}]
  %s2 = inlined_call_operand.hbm [shape: bf16[32,144], index: 2, kind: input, shape index: {}]
  %s3 = inlined_call_operand.vmem [shape: f32[32,1], index: 3, kind: input, shape index: {}]
  %s4 = inlined_call_operand.vmem [shape: bf16[32,288], index: 4, kind: input, shape index: {}]
  %s5 = inlined_call_operand.vmem [shape: f32[32,1], index: 5, kind: input, shape index: {}]
  %s6 = inlined_call_operand.vmem [shape: bf16[16,32], index: 6, kind: input, shape index: {}]
  %s7 = inlined_call_operand.vmem [shape: f32[16,1], index: 7, kind: input, shape index: {}]
  %s8 = inlined_call_operand.hbm [shape: f32[2,16,256], index: 8, kind: output, shape index: {}]
  %s9 = sld [smem:[#allocation0]]
  $region73: #{tpu_custom_call.1} parent=0
    _
  %s11 = ssub.s32 1, %s9
  %s12 = scalar_select 0, %s11, %s9
  $region1: #{tpu_custom_call.1} parent=0
    #allocation2 [shape = 'u8[8192]{0}', space=vmem, size = 0x2000, scoped, tag = 'input window, operand 1, single buffered']
    #allocation3 [shape = 's32[2]{0}', space=sflag, size = 0x8, scoped, tag = 'scoped memory for tpu_custom_call.1']
    #allocation4 [shape = 's32[2]{0}', space=sflag, size = 0x8, scoped, tag = 'scoped memory for tpu_custom_call.1']
    #allocation5 [shape = 'u8[16384]{0}', space=vmem, size = 0x4000, scoped, tag = 'input window, operand 2, single buffered']
    #allocation6 [shape = 's32[1]{0}', space=sflag, size = 0x4, scoped, tag = 'scoped memory for tpu_custom_call.1']
    #allocation7 [shape = 'u8[32768]{0}', space=vmem, size = 0x8000, scoped, tag = 'output window, operand 0']
    %13 = vsyncpa [#allocation3], 0
    %14 = vsyncpa [#allocation6], 0
    %15 = vsyncpa [#allocation4], 0
    %s16 = scalar_lea.sflag [#allocation4], 1
    %17 = vsyncpa %s16, 0
    loop: start=0, step=1, limit=4
    $region2: #{tpu_custom_call.1} parent=1 // loop_pre_header
      _
    $region3: #{tpu_custom_call.1} parent=1 // loop_header
      %s19 = sphi 0, %s23
      %p20 = scmp.ge.s32.totalorder %s19, 4
      %s29 = sphi 0, %s31
      %s32 = sphi 0, %s29
      %s33 = sphi 0, %s32
      %s49 = sphi 0, %s33
      %s53 = sphi 0, %s53
      %s55 = sphi 0, %s53
      %s56 = sphi 0, %s55
      %s70 = sphi 0, %s56
      %s74 = sphi 0, %s74
      %s76 = sphi 0, %s74
      %s77 = sphi 0, %s76
      %s91 = sphi 0, %s77
      %s95 = sphi 0, %s95
      %s97 = sphi 0, %s95
      %s98 = sphi 0, %s97
      %s112 = sphi 0, %s98
      %s116 = sphi 0, %s116
      %s118 = sphi 0, %s116
      %s119 = sphi 0, %s118
      %s133 = sphi 0, %s119
      %s137 = sphi 0, %s137
      %s139 = sphi 0, %s137
      %s140 = sphi 0, %s139
      %s154 = sphi 0, %s140
      %s158 = sphi 0, %s158
      %s160 = sphi 0, %s158
      %s161 = sphi 0, %s160
      %s175 = sphi 0, %s161
      %s179 = sphi 0, %s179
      %s181 = sphi 0, %s179
      %s182 = sphi 0, %s181
      %s196 = sphi 0, %s182
      %s202 = sphi 0, %s204
      %s205 = sphi 0, %s202
      %s206 = sphi 0, %s205
      %s222 = sphi 0, %s206
    $region4: #{tpu_custom_call.1} parent=1 // loop_header_branch
      %22 = sbr.rel (%p20) target = $region8
    $region5: #{tpu_custom_call.1} parent=1 // loop_body
      %s24 = ssub.s32 %s19, 1
      %s25 = ssub.s32 %s19, 2
      %s26 = sadd.s32 %s19, 1
      %s27 = ssub.s32 %s19, %s26
      %p28 = scmp.eq.s32.totalorder %s27, 0
      %s30 = sadd.s32 %s29, 1
      %s31 = scalar_select %p28, %s29, %s30
      %p34 = pneg %p28
      %p35 = scmp.eq.s32.totalorder %s19, 1
      %p36 = por %p34, %p35
      %p37 = scmp.ne.s32.totalorder %s29, %s32
      %p38 = scmp.eq.s32.totalorder %s19, 0
      %p39 = por %p37, %p38
      %p40 = scmp.ne.s32.totalorder %s29, %s32
      %p41 = scmp.eq.s32.totalorder %s24, 1
      %p42 = por %p40, %p41
      %p43 = scmp.ne.s32.totalorder %s32, %s33
      %p44 = scmp.eq.s32.totalorder %s24, 0
      %p45 = por %p43, %p44
      %p46 = scmp.ne.s32.totalorder %s32, %s33
      %p47 = scmp.eq.s32.totalorder %s25, 1
      %p48 = por %p46, %p47
      %p50 = scmp.ne.s32.totalorder %s33, %s49
      %p51 = scmp.eq.s32.totalorder %s25, 0
      %p52 = por %p50, %p51
      %s54 = sadd.s32 %s53, 1
      %p57 = scmp.eq.s32.totalorder %s19, 1
      %p58 = scmp.ne.s32.totalorder %s53, %s55
      %p59 = scmp.eq.s32.totalorder %s19, 0
      %p60 = por %p58, %p59
      %p61 = scmp.ne.s32.totalorder %s53, %s55
      %p62 = scmp.eq.s32.totalorder %s24, 1
      %p63 = por %p61, %p62
      %p64 = scmp.ne.s32.totalorder %s55, %s56
      %p65 = scmp.eq.s32.totalorder %s24, 0
      %p66 = por %p64, %p65
      %p67 = scmp.ne.s32.totalorder %s55, %s56
      %p68 = scmp.eq.s32.totalorder %s25, 1
      %p69 = por %p67, %p68
      %p71 = scmp.ne.s32.totalorder %s56, %s70
      %p72 = scmp.eq.s32.totalorder %s25, 0
      %p73 = por %p71, %p72
      %s75 = sadd.s32 %s74, 1
      %p78 = scmp.eq.s32.totalorder %s19, 1
      %p79 = scmp.ne.s32.totalorder %s74, %s76
      %p80 = scmp.eq.s32.totalorder %s19, 0
      %p81 = por %p79, %p80
      %p82 = scmp.ne.s32.totalorder %s74, %s76
      %p83 = scmp.eq.s32.totalorder %s24, 1
      %p84 = por %p82, %p83
      %p85 = scmp.ne.s32.totalorder %s76, %s77
      %p86 = scmp.eq.s32.totalorder %s24, 0
      %p87 = por %p85, %p86
      %p88 = scmp.ne.s32.totalorder %s76, %s77
      %p89 = scmp.eq.s32.totalorder %s25, 1
      %p90 = por %p88, %p89
      %p92 = scmp.ne.s32.totalorder %s77, %s91
      %p93 = scmp.eq.s32.totalorder %s25, 0
      %p94 = por %p92, %p93
      %s96 = sadd.s32 %s95, 1
      %p99 = scmp.eq.s32.totalorder %s19, 1
      %p100 = scmp.ne.s32.totalorder %s95, %s97
      %p101 = scmp.eq.s32.totalorder %s19, 0
      %p102 = por %p100, %p101
      %p103 = scmp.ne.s32.totalorder %s95, %s97
      %p104 = scmp.eq.s32.totalorder %s24, 1
      %p105 = por %p103, %p104
      %p106 = scmp.ne.s32.totalorder %s97, %s98
      %p107 = scmp.eq.s32.totalorder %s24, 0
      %p108 = por %p106, %p107
      %p109 = scmp.ne.s32.totalorder %s97, %s98
      %p110 = scmp.eq.s32.totalorder %s25, 1
      %p111 = por %p109, %p110
      %p113 = scmp.ne.s32.totalorder %s98, %s112
      %p114 = scmp.eq.s32.totalorder %s25, 0
      %p115 = por %p113, %p114
      %s117 = sadd.s32 %s116, 1
      %p120 = scmp.eq.s32.totalorder %s19, 1
      %p121 = scmp.ne.s32.totalorder %s116, %s118
      %p122 = scmp.eq.s32.totalorder %s19, 0
      %p123 = por %p121, %p122
      %p124 = scmp.ne.s32.totalorder %s116, %s118
      %p125 = scmp.eq.s32.totalorder %s24, 1
      %p126 = por %p124, %p125
      %p127 = scmp.ne.s32.totalorder %s118, %s119
      %p128 = scmp.eq.s32.totalorder %s24, 0
      %p129 = por %p127, %p128
      %p130 = scmp.ne.s32.totalorder %s118, %s119
      %p131 = scmp.eq.s32.totalorder %s25, 1
      %p132 = por %p130, %p131
      %p134 = scmp.ne.s32.totalorder %s119, %s133
      %p135 = scmp.eq.s32.totalorder %s25, 0
      %p136 = por %p134, %p135
      %s138 = sadd.s32 %s137, 1
      %p141 = scmp.eq.s32.totalorder %s19, 1
      %p142 = scmp.ne.s32.totalorder %s137, %s139
      %p143 = scmp.eq.s32.totalorder %s19, 0
      %p144 = por %p142, %p143
      %p145 = scmp.ne.s32.totalorder %s137, %s139
      %p146 = scmp.eq.s32.totalorder %s24, 1
      %p147 = por %p145, %p146
      %p148 = scmp.ne.s32.totalorder %s139, %s140
      %p149 = scmp.eq.s32.totalorder %s24, 0
      %p150 = por %p148, %p149
      %p151 = scmp.ne.s32.totalorder %s139, %s140
      %p152 = scmp.eq.s32.totalorder %s25, 1
      %p153 = por %p151, %p152
      %p155 = scmp.ne.s32.totalorder %s140, %s154
      %p156 = scmp.eq.s32.totalorder %s25, 0
      %p157 = por %p155, %p156
      %s159 = sadd.s32 %s158, 1
      %p162 = scmp.eq.s32.totalorder %s19, 1
      %p163 = scmp.ne.s32.totalorder %s158, %s160
      %p164 = scmp.eq.s32.totalorder %s19, 0
      %p165 = por %p163, %p164
      %p166 = scmp.ne.s32.totalorder %s158, %s160
      %p167 = scmp.eq.s32.totalorder %s24, 1
      %p168 = por %p166, %p167
      %p169 = scmp.ne.s32.totalorder %s160, %s161
      %p170 = scmp.eq.s32.totalorder %s24, 0
      %p171 = por %p169, %p170
      %p172 = scmp.ne.s32.totalorder %s160, %s161
      %p173 = scmp.eq.s32.totalorder %s25, 1
      %p174 = por %p172, %p173
      %p176 = scmp.ne.s32.totalorder %s161, %s175
      %p177 = scmp.eq.s32.totalorder %s25, 0
      %p178 = por %p176, %p177
      %s180 = sadd.s32 %s179, 1
      %p183 = scmp.eq.s32.totalorder %s19, 1
      %p184 = scmp.ne.s32.totalorder %s179, %s181
      %p185 = scmp.eq.s32.totalorder %s19, 0
      %p186 = por %p184, %p185
      %p187 = scmp.ne.s32.totalorder %s179, %s181
      %p188 = scmp.eq.s32.totalorder %s24, 1
      %p189 = por %p187, %p188
      %p190 = scmp.ne.s32.totalorder %s181, %s182
      %p191 = scmp.eq.s32.totalorder %s24, 0
      %p192 = por %p190, %p191
      %p193 = scmp.ne.s32.totalorder %s181, %s182
      %p194 = scmp.eq.s32.totalorder %s25, 1
      %p195 = por %p193, %p194
      %p197 = scmp.ne.s32.totalorder %s182, %s196
      %p198 = scmp.eq.s32.totalorder %s25, 0
      %p199 = por %p197, %p198
      %s200 = ssub.s32 %s19, %s26
      %p201 = scmp.eq.s32.totalorder %s200, 0
      %s203 = sadd.s32 %s202, 1
      %s204 = scalar_select %p201, %s202, %s203
      %p207 = pneg %p201
      %p208 = scmp.eq.s32.totalorder %s19, 1
      %p209 = por %p207, %p208
      %p210 = scmp.ne.s32.totalorder %s202, %s205
      %p211 = scmp.eq.s32.totalorder %s19, 0
      %p212 = por %p210, %p211
      %p213 = scmp.ne.s32.totalorder %s202, %s205
      %p214 = scmp.eq.s32.totalorder %s24, 1
      %p215 = por %p213, %p214
      %p216 = scmp.ne.s32.totalorder %s205, %s206
      %p217 = scmp.eq.s32.totalorder %s24, 0
      %p218 = por %p216, %p217
      %p219 = scmp.ne.s32.totalorder %s205, %s206
      %p220 = scmp.eq.s32.totalorder %s25, 1
      %p221 = por %p219, %p220
      %p223 = scmp.ne.s32.totalorder %s206, %s222
      %p224 = scmp.eq.s32.totalorder %s25, 0
      %p225 = por %p223, %p224
      %p226 = scmp.le.s32.totalorder 1, %s19
      %p227 = scmp.lt.s32.totalorder %s19, 3
      %p228 = pnand %p226, %p227
      %p229 = pneg %p228
      // Predicated region
      $region9: #{tpu_custom_call.1} parent=5 // pred_check
        _
      $region10: #{tpu_custom_call.1} parent=5 // pred_check_branch
        %231 = sbr.rel (%p228) target = $region12
      $region11: #{tpu_custom_call.1} parent=5 // pred_region
        %s232 = ssub.s32 %s19, 1
        // Predicated region
        $region13: #{tpu_custom_call.1} parent=11 // pred_check
          %p233 = pneg %p66
        $region14: #{tpu_custom_call.1} parent=11 // pred_check_branch
          %235 = sbr.rel (%p233) target = $region16
        $region15: #{tpu_custom_call.1} parent=11 // pred_region
          %s237 = ssub.s32 256, 256
          %238 = vsyncadd [#allocation3], %s237
          %s239 = sshll.u32 [#allocation2], 4
          %s240 = int_to_ptr.vmem [resolvable:$true] %s239
          %245 = dma.hbm_to_vmem [thread:$0]  %s1, 256, %s240, [#allocation3], 128, 128, 8
        $region16: #{tpu_custom_call.1} parent=11 // pred_fallthru
          _
        // Predicated region
        $region17: #{tpu_custom_call.1} parent=11 // pred_check
          %p246 = pneg %p87
        $region18: #{tpu_custom_call.1} parent=11 // pred_check_branch
          %248 = sbr.rel (%p246) target = $region20
        $region19: #{tpu_custom_call.1} parent=11 // pred_region
          %s250 = ssub.s32 512, 512
          %251 = vsyncadd [#allocation6], %s250
          %s252 = sshll.u32 [#allocation5], 4
          %s253 = int_to_ptr.vmem [resolvable:$true] %s252
          %258 = dma.hbm_to_vmem [thread:$0]  %s2, 512, %s253, [#allocation6], 128, 128, 8
        $region20: #{tpu_custom_call.1} parent=11 // pred_fallthru
          _
        // Predicated region
        $region21: #{tpu_custom_call.1} parent=11 // pred_check
          %p259 = pneg %p108
        $region22: #{tpu_custom_call.1} parent=11 // pred_check_branch
          %261 = sbr.rel (%p259) target = $region24
        $region23: #{tpu_custom_call.1} parent=11 // pred_region
          _
        $region24: #{tpu_custom_call.1} parent=11 // pred_fallthru
          _
        // Predicated region
        $region25: #{tpu_custom_call.1} parent=11 // pred_check
          %p262 = pneg %p129
        $region26: #{tpu_custom_call.1} parent=11 // pred_check_branch
          %264 = sbr.rel (%p262) target = $region28
        $region27: #{tpu_custom_call.1} parent=11 // pred_region
          _
        $region28: #{tpu_custom_call.1} parent=11 // pred_fallthru
          _
        // Predicated region
        $region29: #{tpu_custom_call.1} parent=11 // pred_check
          %p265 = pneg %p150
        $region30: #{tpu_custom_call.1} parent=11 // pred_check_branch
          %267 = sbr.rel (%p265) target = $region32
        $region31: #{tpu_custom_call.1} parent=11 // pred_region
          _
        $region32: #{tpu_custom_call.1} parent=11 // pred_fallthru
          _
        // Predicated region
        $region33: #{tpu_custom_call.1} parent=11 // pred_check
          %p268 = pneg %p171
        $region34: #{tpu_custom_call.1} parent=11 // pred_check_branch
          %270 = sbr.rel (%p268) target = $region36
        $region35: #{tpu_custom_call.1} parent=11 // pred_region
          _
        $region36: #{tpu_custom_call.1} parent=11 // pred_fallthru
          _
        // Predicated region
        $region37: #{tpu_custom_call.1} parent=11 // pred_check
          %p271 = pneg %p192
        $region38: #{tpu_custom_call.1} parent=11 // pred_check_branch
          %273 = sbr.rel (%p271) target = $region40
        $region39: #{tpu_custom_call.1} parent=11 // pred_region
          _
        $region40: #{tpu_custom_call.1} parent=11 // pred_fallthru
          _
      $region12: #{tpu_custom_call.1} parent=5 // pred_fallthru
        _
      %p274 = scmp.lt.s32.totalorder %s19, 2
      // Predicated region
      $region41: #{tpu_custom_call.1} parent=5 // pred_check
        %p275 = pneg %p274
      $region42: #{tpu_custom_call.1} parent=5 // pred_check_branch
        %277 = sbr.rel (%p275) target = $region44
      $region43: #{tpu_custom_call.1} parent=5 // pred_region
        // Predicated region
        $region45: #{tpu_custom_call.1} parent=43 // pred_check
          %p278 = pneg %p39
        $region46: #{tpu_custom_call.1} parent=43 // pred_check_branch
          %280 = sbr.rel (%p278) target = $region48
        $region47: #{tpu_custom_call.1} parent=43 // pred_region
          %p281 = scmp.lt.s32.totalorder %s19, 1
          %s282 = scalar_select %p281, %s19, 1
          %s283 = smul.addr %s282, 4
          %s284 = smul.addr %s283, 4
          %s285 = scalar_lea.vmem %s0, %s284
        $region48: #{tpu_custom_call.1} parent=43 // pred_fallthru
          _
      $region44: #{tpu_custom_call.1} parent=5 // pred_fallthru
        _
      %p286 = scmp.le.s32.totalorder 1, %s19
      %p287 = scmp.lt.s32.totalorder %s19, 3
      %p288 = pnand %p286, %p287
      %p289 = pneg %p288
      // Predicated region
      $region49: #{tpu_custom_call.1} parent=5 // pred_check
        _
      $region50: #{tpu_custom_call.1} parent=5 // pred_check_branch
        %291 = sbr.rel (%p288) target = $region52
      $region51: #{tpu_custom_call.1} parent=5 // pred_region
        %s292 = ssub.s32 %s19, 1
        // Predicated region
        $region53: #{tpu_custom_call.1} parent=51 // pred_check
          %p293 = pneg %p66
        $region54: #{tpu_custom_call.1} parent=51 // pred_check_branch
          %295 = sbr.rel (%p293) target = $region56
        $region55: #{tpu_custom_call.1} parent=51 // pred_region
          %296 = dma.done [#allocation3], 256
        $region56: #{tpu_custom_call.1} parent=51 // pred_fallthru
          _
        // Predicated region
        $region57: #{tpu_custom_call.1} parent=51 // pred_check
          %p297 = pneg %p87
        $region58: #{tpu_custom_call.1} parent=51 // pred_check_branch
          %299 = sbr.rel (%p297) target = $region60
        $region59: #{tpu_custom_call.1} parent=51 // pred_region
          %300 = dma.done [#allocation6], 512
        $region60: #{tpu_custom_call.1} parent=51 // pred_fallthru
          _
        %p301 = scmp.lt.s32.totalorder %s24, 1
        %s302 = scalar_select %p301, %s24, 1
        %s303 = smul.addr %s302, 4
        %s304 = smul.addr %s303, 4
        %s305 = scalar_lea.vmem %s0, %s304
        %p306 = pneg %p45
        %p307 = pneg %p42
        %p308 = pneg %p66
        %p309 = pneg %p63
        %p310 = pneg %p87
        %p311 = pneg %p84
        %p312 = pneg %p108
        %p313 = pneg %p105
        %p314 = pneg %p129
        %p315 = pneg %p126
        %p316 = pneg %p150
        %p317 = pneg %p147
        %p318 = pneg %p171
        %p319 = pneg %p168
        %p320 = pneg %p192
        %p321 = pneg %p189
        %p322 = pneg %p218
        %p323 = pneg %p215
        %s324 = sand.u32 %s205, 1
        %s325 = scalar_lea.sflag [#allocation4], %s324
        %s326 = sand.u32 %s205, 1
        %s327 = smul.addr %s326, 32
        %s328 = scalar_lea.vmem [#allocation7], %s327
        %p329 = scmp.lt.s32.totalorder %s24, 1
        %s330 = scalar_select %p329, %s24, 1
        %s331 = smul.addr %s330, 4
        %s332 = smul.addr %s331, 4
        %s333 = scalar_lea.vmem %s0, %s332
        %v335 = vld [vmem:[#allocation2] sm:$0x11]
        %v336 = vld [vmem:[#allocation2] sm:$0x22]
        %v337 = vld [vmem:[#allocation2] sm:$0x44]
        %v338 = vld [vmem:[#allocation2] sm:$0x88]
        %v339 = vld [vmem:[#allocation2 + $0x8] sm:$0x11]
        %v340 = vld [vmem:[%s333] sm:$0xff]
        %v341 = vld [vmem:[%s333 + $0x8] sm:$0xff]
        %v344 = vunpack.c.h.b16 %v340
        %v345 = vunpack.c.h.b16 %v341
        %v346 = vpack.c.b16 %v345, %v344
        %347 = vrot.lane.b32.xlu0 %v346, 17
        %v348 = vpop.permute.xlu0 %347
        %v349 = vunpack.c.l.b16 %v340
        %v350 = vunpack.c.l.b16 %v341
        %v351 = vpack.c.b16 %v350, %v349
        %352 = vrot.lane.b32.xlu0 %v351, 17
        %v353 = vpop.permute.xlu0 %352
        %vm354 = vcmask 138240
        %v355 = vsel %vm354, %v353, %v348
        %vm357 = vcmask 138240
        %v360 = vsel %vm357, %v348, %v353
        %v363 = vunpack.c.l.b16 %v335
        %v364 = vunpack.c.h.b16 %v335
        %v365 = vpack.c.b16 %v363, %v363
        %v366 = vpack.c.b16 %v364, %v364
        %v368 = vpack.i.b16 %v365, %v365
        %v370 = vlaneseq
        %v371 = vshrl.u32 %v370, 7
        %v372 = vsub.s32 0, %v371
        %v373 = vrot.slane %v368, %v372
        %v375 = vpack.i.b16 %v366, %v366
        %v377 = vlaneseq
        %v378 = vshrl.u32 %v377, 7
        %v379 = vsub.s32 0, %v378
        %v380 = vrot.slane %v375, %v379
        %v381 = vmul.bf16 %v360, %v373
        %v382 = vmul.bf16 %v355, %v380
        %383 = vrot.lane.b32.xlu0 %v346, 16
        %v384 = vpop.permute.xlu0 %383
        %385 = vrot.lane.b32.xlu0 %v351, 16
        %v386 = vpop.permute.xlu0 %385
        %vm387 = vcmask 130048
        %v388 = vsel %vm387, %v386, %v384
        %vm390 = vcmask 130048
        %v393 = vsel %vm390, %v384, %v386
        %v395 = vshrl.u32 %v365, 16
        %v396 = vpack.i.b16 %v395, %v395
        %v398 = vlaneseq
        %v399 = vshrl.u32 %v398, 7
        %v400 = vsub.s32 0, %v399
        %v401 = vrot.slane %v396, %v400
        %v402 = vshrl.u32 %v366, 16
        %v403 = vpack.i.b16 %v402, %v402
        %v405 = vlaneseq
        %v406 = vshrl.u32 %v405, 7
        %v407 = vsub.s32 0, %v406
        %v408 = vrot.slane %v403, %v407
        %v409 = vmul.bf16 %v393, %v401
        %v410 = vmul.bf16 %v388, %v408
        %411 = vrot.lane.b32.xlu0 %v346, 15
        %v412 = vpop.permute.xlu0 %411
        %413 = vrot.lane.b32.xlu0 %v351, 15
        %v414 = vpop.permute.xlu0 %413
        %vm415 = vcmask 121856
        %v416 = vsel %vm415, %v414, %v412
        %vm418 = vcmask 121856
        %v421 = vsel %vm418, %v412, %v414
        %v424 = vunpack.c.l.b16 %v336
        %v425 = vunpack.c.h.b16 %v336
        %v426 = vpack.c.b16 %v424, %v424
        %v427 = vpack.c.b16 %v425, %v425
        %v429 = vpack.i.b16 %v426, %v426
        %v431 = vlaneseq
        %v432 = vshrl.u32 %v431, 7
        %v433 = vsub.s32 1, %v432
        %v434 = vrot.slane %v429, %v433
        %v436 = vpack.i.b16 %v427, %v427
        %v438 = vlaneseq
        %v439 = vshrl.u32 %v438, 7
        %v440 = vsub.s32 1, %v439
        %v441 = vrot.slane %v436, %v440
        %v442 = vmul.bf16 %v421, %v434
        %v443 = vmul.bf16 %v416, %v441
        %444 = vrot.lane.b32.xlu0 %v346, 1
        %v445 = vpop.permute.xlu0 %444
        %446 = vrot.lane.b32.xlu0 %v351, 1
        %v447 = vpop.permute.xlu0 %446
        %vm448 = vcmask 7168
        %v449 = vsel %vm448, %v447, %v445
        %vm451 = vcmask 7168
        %v454 = vsel %vm451, %v445, %v447
        %v456 = vshrl.u32 %v426, 16
        %v457 = vpack.i.b16 %v456, %v456
        %v459 = vlaneseq
        %v460 = vshrl.u32 %v459, 7
        %v461 = vsub.s32 1, %v460
        %v462 = vrot.slane %v457, %v461
        %v463 = vshrl.u32 %v427, 16
        %v464 = vpack.i.b16 %v463, %v463
        %v466 = vlaneseq
        %v467 = vshrl.u32 %v466, 7
        %v468 = vsub.s32 1, %v467
        %v469 = vrot.slane %v464, %v468
        %v470 = vmul.bf16 %v454, %v462
        %v471 = vmul.bf16 %v449, %v469
        %472 = vrot.lane.b32.xlu0 %v351, 127
        %v473 = vpop.permute.xlu0 %472
        %474 = vrot.lane.b32.xlu0 %v346, 127
        %v475 = vpop.permute.xlu0 %474
        %vm476 = vcmask 1039360
        %v477 = vsel %vm476, %v473, %v475
        %vm479 = vcmask 1039360
        %v482 = vsel %vm479, %v475, %v473
        %v485 = vunpack.c.l.b16 %v337
        %v486 = vunpack.c.h.b16 %v337
        %v487 = vpack.c.b16 %v485, %v485
        %v488 = vpack.c.b16 %v486, %v486
        %v490 = vshrl.u32 %v487, 16
        %v491 = vpack.i.b16 %v490, %v490
        %v493 = vlaneseq
        %v494 = vshrl.u32 %v493, 7
        %v495 = vsub.s32 2, %v494
        %v496 = vrot.slane %v491, %v495
        %v498 = vshrl.u32 %v488, 16
        %v499 = vpack.i.b16 %v498, %v498
        %v501 = vlaneseq
        %v502 = vshrl.u32 %v501, 7
        %v503 = vsub.s32 2, %v502
        %v504 = vrot.slane %v499, %v503
        %v505 = vmul.bf16 %v477, %v496
        %v506 = vmul.bf16 %v482, %v504
        %507 = vrot.lane.b32.xlu0 %v351, 113
        %v508 = vpop.permute.xlu0 %507
        %509 = vrot.lane.b32.xlu0 %v346, 113
        %v510 = vpop.permute.xlu0 %509
        %vm511 = vcmask 924672
        %v512 = vsel %vm511, %v508, %v510
        %vm514 = vcmask 924672
        %v517 = vsel %vm514, %v510, %v508
        %v520 = vunpack.c.l.b16 %v338
        %v521 = vunpack.c.h.b16 %v338
        %v522 = vpack.c.b16 %v520, %v520
        %v523 = vpack.c.b16 %v521, %v521
        %v525 = vpack.i.b16 %v522, %v522
        %v527 = vlaneseq
        %v528 = vshrl.u32 %v527, 7
        %v529 = vsub.s32 3, %v528
        %v530 = vrot.slane %v525, %v529
        %v532 = vpack.i.b16 %v523, %v523
        %v534 = vlaneseq
        %v535 = vshrl.u32 %v534, 7
        %v536 = vsub.s32 3, %v535
        %v537 = vrot.slane %v532, %v536
        %v538 = vmul.bf16 %v512, %v530
        %v539 = vmul.bf16 %v517, %v537
        %540 = vrot.lane.b32.xlu0 %v351, 112
        %v541 = vpop.permute.xlu0 %540
        %542 = vrot.lane.b32.xlu0 %v346, 112
        %v543 = vpop.permute.xlu0 %542
        %vm544 = vcmask 916480
        %v545 = vsel %vm544, %v541, %v543
        %vm547 = vcmask 916480
        %v550 = vsel %vm547, %v543, %v541
        %v552 = vshrl.u32 %v522, 16
        %v553 = vpack.i.b16 %v552, %v552
        %v555 = vlaneseq
        %v556 = vshrl.u32 %v555, 7
        %v557 = vsub.s32 3, %v556
        %v558 = vrot.slane %v553, %v557
        %v559 = vshrl.u32 %v523, 16
        %v560 = vpack.i.b16 %v559, %v559
        %v562 = vlaneseq
        %v563 = vshrl.u32 %v562, 7
        %v564 = vsub.s32 3, %v563
        %v565 = vrot.slane %v560, %v564
        %v566 = vmul.bf16 %v545, %v558
        %v567 = vmul.bf16 %v550, %v565
        %568 = vrot.lane.b32.xlu0 %v351, 111
        %v569 = vpop.permute.xlu0 %568
        %570 = vrot.lane.b32.xlu0 %v346, 111
        %v571 = vpop.permute.xlu0 %570
        %vm572 = vcmask 908288
        %v573 = vsel %vm572, %v569, %v571
        %vm575 = vcmask 908288
        %v578 = vsel %vm575, %v571, %v569
        %v581 = vunpack.c.l.b16 %v339
        %v582 = vunpack.c.h.b16 %v339
        %v583 = vpack.c.b16 %v581, %v581
        %v584 = vpack.c.b16 %v582, %v582
        %v586 = vpack.i.b16 %v583, %v583
        %v588 = vlaneseq
        %v589 = vshrl.u32 %v588, 7
        %v590 = vsub.s32 0, %v589
        %v591 = vrot.slane %v586, %v590
        %v593 = vpack.i.b16 %v584, %v584
        %v595 = vlaneseq
        %v596 = vshrl.u32 %v595, 7
        %v597 = vsub.s32 0, %v596
        %v598 = vrot.slane %v593, %v597
        %v599 = vmul.bf16 %v573, %v591
        %v600 = vmul.bf16 %v578, %v598
        %v603 = vld [vmem:[#allocation5] sm:$0xff]
        %v604 = vld [vmem:[#allocation5 + $0x8] sm:$0xff]
        %v605 = vld [vmem:[#allocation5 + $0x10] sm:$0xff]
        %v606 = vld [vmem:[#allocation5 + $0x18] sm:$0xff]
        %v607 = vld [vmem:[%s3] sm:$0xff]
        %v608 = vld [vmem:[%s3 + $0x8] sm:$0xff]
        %v609 = vld [vmem:[%s3 + $0x10] sm:$0xff]
        %v610 = vld [vmem:[%s3 + $0x18] sm:$0xff]
        %612 = vset.pattern.permute.xlu0 0
        %613 = vperm.xlu0 %612, %v607
        %v614 = vpop.permute.xlu0 %613
        %617 = vset.pattern.permute.xlu0 0
        %618 = vperm.xlu0 %617, %v608
        %v619 = vpop.permute.xlu0 %618
        %622 = vset.pattern.permute.xlu0 0
        %623 = vperm.xlu0 %622, %v609
        %v624 = vpop.permute.xlu0 %623
        %627 = vset.pattern.permute.xlu0 0
        %628 = vperm.xlu0 %627, %v610
        %v629 = vpop.permute.xlu0 %628
        %v635 = vunpack.c.l.b16 %v603
        %v636 = vunpack.c.h.b16 %v603
        %v637 = vunpack.c.l.b16 %v604
        %v638 = vunpack.c.h.b16 %v604
        %v639 = vunpack.c.l.b16 %v605
        %v640 = vunpack.c.h.b16 %v605
        %v641 = vunpack.c.l.b16 %v606
        %v642 = vunpack.c.h.b16 %v606
        %v643 = vpack.c.b16 %v637, %v635
        %v644 = vpack.c.b16 %v638, %v636
        %v645 = vpack.c.b16 %v641, %v639
        %v646 = vpack.c.b16 %v642, %v640
        %v650 = vsel %vm390, %v644, 0
        %v653 = vsel %vm390, %v646, 0
        %655 = vmatprep.subr.bf16.mxu0 %v382
        %656 = vmatpush1.bf16.msra.mxu0 %v381
        %657 = vmatprep.subr.bf16.mxu0 %v410
        %658 = vmatpush1.bf16.msra.mxu0 %v409
        %659 = vmatprep.subr.bf16.mxu0 %v443
        %660 = vmatpush1.bf16.msra.mxu0 %v442
        %661 = vmatprep.subr.bf16.mxu0 %v471
        %662 = vmatpush1.bf16.msra.mxu0 %v470
        %663 = vmatprep.subr.bf16.mxu0 %v346
        %664 = vmatpush1.bf16.msra.mxu0 %v351
        %665 = vmatprep.subr.bf16.mxu0 %v506
        %666 = vmatpush1.bf16.msra.mxu0 %v505
        %667 = vmatprep.subr.bf16.mxu0 %v539
        %668 = vmatpush1.bf16.msra.mxu0 %v538
        %669 = vmatprep.subr.bf16.mxu0 %v567
        %670 = vmatpush1.bf16.msra.mxu0 %v566
        %671 = vmatprep.subr.bf16.mxu0 %v600
        %672 = vmatpush1.bf16.msra.mxu0 %v599
        %673 = vmatprep.subr.bf16.mxu0 0
        %674 = vmatpush1.bf16.msra.mxu0 0
        %675 = vmatprep.subr.bf16.mxu0 0
        %676 = vmatpush1.bf16.msra.mxu0 0
        %677 = vmatprep.subr.bf16.mxu0 0
        %678 = vmatpush1.bf16.msra.mxu0 0
        %679 = vmatprep.subr.bf16.mxu0 0
        %680 = vmatpush1.bf16.msra.mxu0 0
        %681 = vmatprep.subr.bf16.mxu0 0
        %682 = vmatpush1.bf16.msra.mxu0 0
        %683 = vmatprep.subr.bf16.mxu0 0
        %684 = vmatpush1.bf16.msra.mxu0 0
        %685 = vmatprep.subr.bf16.mxu0 0
        %686 = vmatpush1.bf16.msra.mxu0 0
        %687 = vmatprep.mubr.bf16.mxu0 %v650
        %688 = vmatmul.mubr.bf16.gmra.mrb[0].mxu0 %v643
        %v689 = vpop.f32.mrb[0].mxu0
        %v690 = vadd.f32 %v614, %v689
        %v691 = vpop.f32.mrb[0].mxu0
        %v692 = vadd.f32 %v614, %v691
        %v693 = vpop.f32.mrb[0].mxu0
        %v694 = vadd.f32 %v619, %v693
        %v695 = vpop.f32.mrb[0].mxu0
        %v696 = vadd.f32 %v619, %v695
        %697 = vmatprep.mubr.bf16.mxu0 %v653
        %698 = vmatmul.mubr.bf16.gmra.mrb[0].mxu0 %v645
        %v699 = vpop.f32.mrb[0].mxu0
        %v700 = vadd.f32 %v624, %v699
        %v701 = vpop.f32.mrb[0].mxu0
        %v702 = vadd.f32 %v624, %v701
        %v703 = vpop.f32.mrb[0].mxu0
        %v704 = vadd.f32 %v629, %v703
        %v705 = vpop.f32.mrb[0].mxu0
        %v706 = vadd.f32 %v629, %v705
        %707 = vdwg.mxu0
        %v708 = vmax.f32 %v690, 0.0
        %v709 = vmax.f32 %v692, 0.0
        %v710 = vmax.f32 %v694, 0.0
        %v711 = vmax.f32 %v696, 0.0
        %v712 = vmax.f32 %v700, 0.0
        %v713 = vmax.f32 %v702, 0.0
        %v714 = vmax.f32 %v704, 0.0
        %v715 = vmax.f32 %v706, 0.0
        %v716 = vpack.c.bf16 %v710, %v708
        %v717 = vpack.c.bf16 %v711, %v709
        %v718 = vpack.c.bf16 %v714, %v712
        %v719 = vpack.c.bf16 %v715, %v713
        %722 = vrot.lane.b32.xlu0 %v717, 17
        %v723 = vpop.permute.xlu0 %722
        %724 = vrot.lane.b32.xlu0 %v719, 17
        %v725 = vpop.permute.xlu0 %724
        %728 = vrot.lane.b32.xlu0 %v716, 17
        %v729 = vpop.permute.xlu0 %728
        %730 = vrot.lane.b32.xlu0 %v718, 17
        %v731 = vpop.permute.xlu0 %730
        %v732 = vsel %vm354, %v729, %v723
        %v733 = vsel %vm354, %v731, %v725
        %v738 = vsel %vm357, %v723, %v729
        %v742 = vsel %vm357, %v725, %v731
        %v744 = vmul.bf16 %v738, %v373
        %v745 = vmul.bf16 %v732, %v380
        %v746 = vmul.bf16 %v742, %v373
        %v747 = vmul.bf16 %v733, %v380
        %748 = vrot.lane.b32.xlu0 %v717, 16
        %v749 = vpop.permute.xlu0 %748
        %750 = vrot.lane.b32.xlu0 %v719, 16
        %v751 = vpop.permute.xlu0 %750
        %752 = vrot.lane.b32.xlu0 %v716, 16
        %v753 = vpop.permute.xlu0 %752
        %754 = vrot.lane.b32.xlu0 %v718, 16
        %v755 = vpop.permute.xlu0 %754
        %v756 = vsel %vm387, %v753, %v749
        %v757 = vsel %vm387, %v755, %v751
        %v762 = vsel %vm390, %v749, %v753
        %v766 = vsel %vm390, %v751, %v755
        %v768 = vmul.bf16 %v762, %v401
        %v769 = vmul.bf16 %v756, %v408
        %v770 = vmul.bf16 %v766, %v401
        %v771 = vmul.bf16 %v757, %v408
        %772 = vrot.lane.b32.xlu0 %v717, 15
        %v773 = vpop.permute.xlu0 %772
        %774 = vrot.lane.b32.xlu0 %v719, 15
        %v775 = vpop.permute.xlu0 %774
        %776 = vrot.lane.b32.xlu0 %v716, 15
        %v777 = vpop.permute.xlu0 %776
        %778 = vrot.lane.b32.xlu0 %v718, 15
        %v779 = vpop.permute.xlu0 %778
        %v780 = vsel %vm415, %v777, %v773
        %v781 = vsel %vm415, %v779, %v775
        %v786 = vsel %vm418, %v773, %v777
        %v790 = vsel %vm418, %v775, %v779
        %v792 = vmul.bf16 %v786, %v434
        %v793 = vmul.bf16 %v780, %v441
        %v794 = vmul.bf16 %v790, %v434
        %v795 = vmul.bf16 %v781, %v441
        %796 = vrot.lane.b32.xlu0 %v717, 1
        %v797 = vpop.permute.xlu0 %796
        %798 = vrot.lane.b32.xlu0 %v719, 1
        %v799 = vpop.permute.xlu0 %798
        %800 = vrot.lane.b32.xlu0 %v716, 1
        %v801 = vpop.permute.xlu0 %800
        %802 = vrot.lane.b32.xlu0 %v718, 1
        %v803 = vpop.permute.xlu0 %802
        %v804 = vsel %vm448, %v801, %v797
        %v805 = vsel %vm448, %v803, %v799
        %v810 = vsel %vm451, %v797, %v801
        %v814 = vsel %vm451, %v799, %v803
        %v816 = vmul.bf16 %v810, %v462
        %v817 = vmul.bf16 %v804, %v469
        %v818 = vmul.bf16 %v814, %v462
        %v819 = vmul.bf16 %v805, %v469
        %820 = vrot.lane.b32.xlu0 %v716, 127
        %v821 = vpop.permute.xlu0 %820
        %822 = vrot.lane.b32.xlu0 %v717, 127
        %v823 = vpop.permute.xlu0 %822
        %824 = vrot.lane.b32.xlu0 %v718, 127
        %v825 = vpop.permute.xlu0 %824
        %826 = vrot.lane.b32.xlu0 %v719, 127
        %v827 = vpop.permute.xlu0 %826
        %v828 = vsel %vm476, %v821, %v823
        %v829 = vsel %vm476, %v825, %v827
        %v834 = vsel %vm479, %v823, %v821
        %v838 = vsel %vm479, %v827, %v825
        %v840 = vmul.bf16 %v828, %v496
        %v841 = vmul.bf16 %v834, %v504
        %v842 = vmul.bf16 %v829, %v496
        %v843 = vmul.bf16 %v838, %v504
        %844 = vrot.lane.b32.xlu0 %v716, 113
        %v845 = vpop.permute.xlu0 %844
        %846 = vrot.lane.b32.xlu0 %v717, 113
        %v847 = vpop.permute.xlu0 %846
        %848 = vrot.lane.b32.xlu0 %v718, 113
        %v849 = vpop.permute.xlu0 %848
        %850 = vrot.lane.b32.xlu0 %v719, 113
        %v851 = vpop.permute.xlu0 %850
        %v852 = vsel %vm511, %v845, %v847
        %v853 = vsel %vm511, %v849, %v851
        %v858 = vsel %vm514, %v847, %v845
        %v862 = vsel %vm514, %v851, %v849
        %v864 = vmul.bf16 %v852, %v530
        %v865 = vmul.bf16 %v858, %v537
        %v866 = vmul.bf16 %v853, %v530
        %v867 = vmul.bf16 %v862, %v537
        %868 = vrot.lane.b32.xlu0 %v716, 112
        %v869 = vpop.permute.xlu0 %868
        %870 = vrot.lane.b32.xlu0 %v717, 112
        %v871 = vpop.permute.xlu0 %870
        %872 = vrot.lane.b32.xlu0 %v718, 112
        %v873 = vpop.permute.xlu0 %872
        %874 = vrot.lane.b32.xlu0 %v719, 112
        %v875 = vpop.permute.xlu0 %874
        %v876 = vsel %vm544, %v869, %v871
        %v877 = vsel %vm544, %v873, %v875
        %v882 = vsel %vm547, %v871, %v869
        %v886 = vsel %vm547, %v875, %v873
        %v888 = vmul.bf16 %v876, %v558
        %v889 = vmul.bf16 %v882, %v565
        %v890 = vmul.bf16 %v877, %v558
        %v891 = vmul.bf16 %v886, %v565
        %892 = vrot.lane.b32.xlu0 %v716, 111
        %v893 = vpop.permute.xlu0 %892
        %894 = vrot.lane.b32.xlu0 %v717, 111
        %v895 = vpop.permute.xlu0 %894
        %896 = vrot.lane.b32.xlu0 %v718, 111
        %v897 = vpop.permute.xlu0 %896
        %898 = vrot.lane.b32.xlu0 %v719, 111
        %v899 = vpop.permute.xlu0 %898
        %v900 = vsel %vm572, %v893, %v895
        %v901 = vsel %vm572, %v897, %v899
        %v906 = vsel %vm575, %v895, %v893
        %v910 = vsel %vm575, %v899, %v897
        %v912 = vmul.bf16 %v900, %v591
        %v913 = vmul.bf16 %v906, %v598
        %v914 = vmul.bf16 %v901, %v591
        %v915 = vmul.bf16 %v910, %v598
        %v916 = vld [vmem:[%s4] sm:$0xff]
        %v917 = vld [vmem:[%s4 + $0x8] sm:$0xf]
        %v918 = vld [vmem:[%s4 + $0xc] sm:$0xff]
        %v919 = vld [vmem:[%s4 + $0x14] sm:$0xf]
        %v920 = vld [vmem:[%s4 + $0x18] sm:$0xff]
        %v921 = vld [vmem:[%s4 + $0x20] sm:$0xf]
        %v922 = vld [vmem:[%s4 + $0x24] sm:$0xff]
        %v923 = vld [vmem:[%s4 + $0x2c] sm:$0xf]
        %v924 = vld [vmem:[%s5] sm:$0xff]
        %v925 = vld [vmem:[%s5 + $0x8] sm:$0xff]
        %v926 = vld [vmem:[%s5 + $0x10] sm:$0xff]
        %v927 = vld [vmem:[%s5 + $0x18] sm:$0xff]
        %929 = vset.pattern.permute.xlu0 0
        %930 = vperm.xlu0 %929, %v924
        %v931 = vpop.permute.xlu0 %930
        %934 = vset.pattern.permute.xlu0 0
        %935 = vperm.xlu0 %934, %v925
        %v936 = vpop.permute.xlu0 %935
        %939 = vset.pattern.permute.xlu0 0
        %940 = vperm.xlu0 %939, %v926
        %v941 = vpop.permute.xlu0 %940
        %944 = vset.pattern.permute.xlu0 0
        %945 = vperm.xlu0 %944, %v927
        %v946 = vpop.permute.xlu0 %945
        %v956 = vunpack.c.l.b16 %v916
        %v957 = vunpack.c.h.b16 %v916
        %v958 = vunpack.c.l.b16 %v917
        %v959 = vunpack.c.l.b16 %v918
        %v960 = vunpack.c.h.b16 %v918
        %v961 = vunpack.c.l.b16 %v919
        %v962 = vunpack.c.l.b16 %v920
        %v963 = vunpack.c.h.b16 %v920
        %v964 = vunpack.c.l.b16 %v921
        %v965 = vunpack.c.l.b16 %v922
        %v966 = vunpack.c.h.b16 %v922
        %v967 = vunpack.c.l.b16 %v923
        %v968 = vpack.c.b16 %v959, %v956
        %v969 = vpack.c.b16 %v960, %v957
        %v970 = vpack.c.b16 %v961, %v958
        %v971 = vpack.c.b16 %v965, %v962
        %v972 = vpack.c.b16 %v966, %v963
        %v973 = vpack.c.b16 %v967, %v964
        %vm978 = vcmask 261120
        %v980 = vsel %vm978, %v970, 0
        %v983 = vsel %vm978, %v973, 0
        %985 = vmatprep.subr.bf16.mxu0 %v745
        %986 = vmatpush1.bf16.msra.mxu0 %v744
        %987 = vmatprep.subr.bf16.mxu0 %v747
        %988 = vmatpush1.bf16.msra.mxu0 %v746
        %989 = vmatprep.subr.bf16.mxu0 %v769
        %990 = vmatpush1.bf16.msra.mxu0 %v768
        %991 = vmatprep.subr.bf16.mxu0 %v771
        %992 = vmatpush1.bf16.msra.mxu0 %v770
        %993 = vmatprep.subr.bf16.mxu0 %v793
        %994 = vmatpush1.bf16.msra.mxu0 %v792
        %995 = vmatprep.subr.bf16.mxu0 %v795
        %996 = vmatpush1.bf16.msra.mxu0 %v794
        %997 = vmatprep.subr.bf16.mxu0 %v817
        %998 = vmatpush1.bf16.msra.mxu0 %v816
        %999 = vmatprep.subr.bf16.mxu0 %v819
        %1000 = vmatpush1.bf16.msra.mxu0 %v818
        %1001 = vmatprep.subr.bf16.mxu0 %v717
        %1002 = vmatpush1.bf16.msra.mxu0 %v716
        %1003 = vmatprep.subr.bf16.mxu0 %v719
        %1004 = vmatpush1.bf16.msra.mxu0 %v718
        %1005 = vmatprep.subr.bf16.mxu0 %v841
        %1006 = vmatpush1.bf16.msra.mxu0 %v840
        %1007 = vmatprep.subr.bf16.mxu0 %v843
        %1008 = vmatpush1.bf16.msra.mxu0 %v842
        %1009 = vmatprep.subr.bf16.mxu0 %v865
        %1010 = vmatpush1.bf16.msra.mxu0 %v864
        %1011 = vmatprep.subr.bf16.mxu0 %v867
        %1012 = vmatpush1.bf16.msra.mxu0 %v866
        %1013 = vmatprep.subr.bf16.mxu0 %v889
        %1014 = vmatpush1.bf16.msra.mxu0 %v888
        %1015 = vmatprep.subr.bf16.mxu0 %v891
        %1016 = vmatpush1.bf16.msra.mxu0 %v890
        %1017 = vmatprep.mubr.bf16.mxu0 %v969
        %1018 = vmatmul.mubr.bf16.gmra.mrb[0].mxu0 %v968
        %v1019 = vpop.f32.mrb[0].mxu0
        %v1020 = vadd.f32 %v931, %v1019
        %v1021 = vpop.f32.mrb[0].mxu0
        %v1022 = vadd.f32 %v931, %v1021
        %v1023 = vpop.f32.mrb[0].mxu0
        %v1024 = vadd.f32 %v936, %v1023
        %v1025 = vpop.f32.mrb[0].mxu0
        %v1026 = vadd.f32 %v936, %v1025
        %1027 = vmatprep.mubr.bf16.mxu0 %v972
        %1028 = vmatmul.mubr.bf16.gmra.mrb[0].mxu0 %v971
        %v1029 = vpop.f32.mrb[0].mxu0
        %v1030 = vadd.f32 %v941, %v1029
        %v1031 = vpop.f32.mrb[0].mxu0
        %v1032 = vadd.f32 %v941, %v1031
        %v1033 = vpop.f32.mrb[0].mxu0
        %v1034 = vadd.f32 %v946, %v1033
        %v1035 = vpop.f32.mrb[0].mxu0
        %v1036 = vadd.f32 %v946, %v1035
        %1037 = vdwg.mxu0
        %1038 = vmatprep.subr.bf16.mxu0 %v913
        %1039 = vmatpush1.bf16.msra.mxu0 %v912
        %1040 = vmatprep.subr.bf16.mxu0 %v915
        %1041 = vmatpush1.bf16.msra.mxu0 %v914
        %1042 = vmatprep.subr.bf16.mxu0 0
        %1043 = vmatpush1.bf16.msra.mxu0 0
        %1044 = vmatprep.subr.bf16.mxu0 0
        %1045 = vmatpush1.bf16.msra.mxu0 0
        %1046 = vmatprep.subr.bf16.mxu0 0
        %1047 = vmatpush1.bf16.msra.mxu0 0
        %1048 = vmatprep.subr.bf16.mxu0 0
        %1049 = vmatpush1.bf16.msra.mxu0 0
        %1050 = vmatprep.subr.bf16.mxu0 0
        %1051 = vmatpush1.bf16.msra.mxu0 0
        %1052 = vmatprep.subr.bf16.mxu0 0
        %1053 = vmatpush1.bf16.msra.mxu0 0
        %1054 = vmatprep.subr.bf16.mxu0 0
        %1055 = vmatpush1.bf16.msra.mxu0 0
        %1056 = vmatprep.subr.bf16.mxu0 0
        %1057 = vmatpush1.bf16.msra.mxu0 0
        %1058 = vmatprep.subr.bf16.mxu0 0
        %1059 = vmatpush1.bf16.msra.mxu0 0
        %1060 = vmatprep.subr.bf16.mxu0 0
        %1061 = vmatpush1.bf16.msra.mxu0 0
        %1062 = vmatprep.subr.bf16.mxu0 0
        %1063 = vmatpush1.bf16.msra.mxu0 0
        %1064 = vmatprep.subr.bf16.mxu0 0
        %1065 = vmatpush1.bf16.msra.mxu0 0
        %1066 = vmatprep.subr.bf16.mxu0 0
        %1067 = vmatpush1.bf16.msra.mxu0 0
        %1068 = vmatprep.subr.bf16.mxu0 0
        %1069 = vmatpush1.bf16.msra.mxu0 0
        %1070 = vmatprep.mubr.bf16.mxu0 0
        %1071 = vmatmul.mubr.bf16.gmra.mrb[0].mxu0 %v980
        %v1072 = vpop.f32.mrb[0].mxu0
        %v1073 = vadd.f32 %v1020, %v1072
        %v1074 = vpop.f32.mrb[0].mxu0
        %v1075 = vadd.f32 %v1022, %v1074
        %v1076 = vpop.f32.mrb[0].mxu0
        %v1077 = vadd.f32 %v1024, %v1076
        %v1078 = vpop.f32.mrb[0].mxu0
        %v1079 = vadd.f32 %v1026, %v1078
        %1080 = vmatprep.mubr.bf16.mxu0 0
        %1081 = vmatmul.mubr.bf16.gmra.mrb[0].mxu0 %v983
        %v1082 = vpop.f32.mrb[0].mxu0
        %v1083 = vadd.f32 %v1030, %v1082
        %v1084 = vpop.f32.mrb[0].mxu0
        %v1085 = vadd.f32 %v1032, %v1084
        %v1086 = vpop.f32.mrb[0].mxu0
        %v1087 = vadd.f32 %v1034, %v1086
        %v1088 = vpop.f32.mrb[0].mxu0
        %v1089 = vadd.f32 %v1036, %v1088
        %1090 = vdwg.mxu0
        %v1091 = vmax.f32 %v1073, 0.0
        %v1092 = vmax.f32 %v1075, 0.0
        %v1093 = vmax.f32 %v1077, 0.0
        %v1094 = vmax.f32 %v1079, 0.0
        %v1095 = vmax.f32 %v1083, 0.0
        %v1096 = vmax.f32 %v1085, 0.0
        %v1097 = vmax.f32 %v1087, 0.0
        %v1098 = vmax.f32 %v1089, 0.0
        %v1099 = vpack.c.bf16 %v1093, %v1091
        %v1100 = vpack.c.bf16 %v1094, %v1092
        %v1101 = vpack.c.bf16 %v1097, %v1095
        %v1102 = vpack.c.bf16 %v1098, %v1096
        %v1103 = vld [vmem:[%s6] sm:$0xf]
        %v1104 = vld [vmem:[%s6 + $0x4] sm:$0xf]
        %v1105 = vld [vmem:[%s7] sm:$0xff]
        %v1106 = vld [vmem:[%s7 + $0x8] sm:$0xff]
        %1108 = vset.pattern.permute.xlu0 0
        %1109 = vperm.xlu0 %1108, %v1105
        %v1110 = vpop.permute.xlu0 %1109
        %1113 = vset.pattern.permute.xlu0 0
        %1114 = vperm.xlu0 %1113, %v1106
        %v1115 = vpop.permute.xlu0 %1114
        %v1119 = vunpack.c.l.b16 %v1103
        %v1120 = vunpack.c.l.b16 %v1104
        %v1121 = vpack.c.b16 %v1120, %v1119
        %v1123 = vsel %vm978, %v1121, 0
        %1125 = vmatprep.subr.bf16.mxu0 %v1100
        %1126 = vmatpush1.bf16.msra.mxu0 %v1099
        %1127 = vmatprep.subr.bf16.mxu0 %v1102
        %1128 = vmatpush1.bf16.msra.mxu0 %v1101
        %1129 = vmatprep.subr.bf16.mxu0 0
        %1130 = vmatpush1.bf16.msra.mxu0 0
        %1131 = vmatprep.subr.bf16.mxu0 0
        %1132 = vmatpush1.bf16.msra.mxu0 0
        %1133 = vmatprep.subr.bf16.mxu0 0
        %1134 = vmatpush1.bf16.msra.mxu0 0
        %1135 = vmatprep.subr.bf16.mxu0 0
        %1136 = vmatpush1.bf16.msra.mxu0 0
        %1137 = vmatprep.subr.bf16.mxu0 0
        %1138 = vmatpush1.bf16.msra.mxu0 0
        %1139 = vmatprep.subr.bf16.mxu0 0
        %1140 = vmatpush1.bf16.msra.mxu0 0
        %1141 = vmatprep.subr.bf16.mxu0 0
        %1142 = vmatpush1.bf16.msra.mxu0 0
        %1143 = vmatprep.subr.bf16.mxu0 0
        %1144 = vmatpush1.bf16.msra.mxu0 0
        %1145 = vmatprep.subr.bf16.mxu0 0
        %1146 = vmatpush1.bf16.msra.mxu0 0
        %1147 = vmatprep.subr.bf16.mxu0 0
        %1148 = vmatpush1.bf16.msra.mxu0 0
        %1149 = vmatprep.subr.bf16.mxu0 0
        %1150 = vmatpush1.bf16.msra.mxu0 0
        %1151 = vmatprep.subr.bf16.mxu0 0
        %1152 = vmatpush1.bf16.msra.mxu0 0
        %1153 = vmatprep.subr.bf16.mxu0 0
        %1154 = vmatpush1.bf16.msra.mxu0 0
        %1155 = vmatprep.subr.bf16.mxu0 0
        %1156 = vmatpush1.bf16.msra.mxu0 0
        %1157 = vmatprep.mubr.bf16.mxu0 0
        %1158 = vmatmul.mubr.bf16.gmra.mrb[0].mxu0 %v1123
        %v1159 = vpop.f32.mrb[0].mxu0
        %v1160 = vadd.f32 %v1110, %v1159
        %v1161 = vpop.f32.mrb[0].mxu0
        %v1162 = vadd.f32 %v1110, %v1161
        %v1163 = vpop.f32.mrb[0].mxu0
        %v1164 = vadd.f32 %v1115, %v1163
        %v1165 = vpop.f32.mrb[0].mxu0
        %v1166 = vadd.f32 %v1115, %v1165
        %1167 = vdwg.mxu0
        %1168 = vst [vmem:[%s328] sm:$0xff] %v1160
        %1169 = vst [vmem:[%s328 + $0x8] sm:$0xff] %v1162
        %1170 = vst [vmem:[%s328 + $0x10] sm:$0xff] %v1164
        %1171 = vst [vmem:[%s328 + $0x18] sm:$0xff] %v1166
        %s1172 = sand.u32 %s205, 1
        %s1173 = scalar_lea.sflag [#allocation4], %s1172
        %s1174 = sand.u32 %s205, 1
        %s1175 = smul.addr %s1174, 32
        %s1176 = scalar_lea.vmem [#allocation7], %s1175
        // Predicated region
        $region61: #{tpu_custom_call.1} parent=51 // pred_check
          %p1177 = pneg %p215
        $region62: #{tpu_custom_call.1} parent=51 // pred_check_branch
          %1179 = sbr.rel (%p1177) target = $region64
        $region63: #{tpu_custom_call.1} parent=51 // pred_region
          %s1181 = ssub.s32 512, 512
          %1182 = vsyncadd %s1173, %s1181
          %s1183 = smul.addr %s24, 4
          %s1184 = smul.addr %s1183, 128
          %s1185 = scalar_lea.hbm %s8, %s1184
          %s1186 = sshll.u32 %s1176, 4
          %s1187 = int_to_ptr.vmem [resolvable:$true] %s1186
          %1192 = dma.vmem_to_hbm [thread:$0]  %s1187, 512, %s1185, %s1173, 256, 256, 16
        $region64: #{tpu_custom_call.1} parent=51 // pred_fallthru
          _
      $region52: #{tpu_custom_call.1} parent=5 // pred_fallthru
        _
      %p1193 = scmp.le.s32.totalorder 2, %s19
      // Predicated region
      $region65: #{tpu_custom_call.1} parent=5 // pred_check
        %p1194 = pneg %p1193
      $region66: #{tpu_custom_call.1} parent=5 // pred_check_branch
        %1196 = sbr.rel (%p1194) target = $region68
      $region67: #{tpu_custom_call.1} parent=5 // pred_region
        %s1197 = ssub.s32 %s19, 2
        // Predicated region
        $region69: #{tpu_custom_call.1} parent=67 // pred_check
          %p1198 = pneg %p221
        $region70: #{tpu_custom_call.1} parent=67 // pred_check_branch
          %1200 = sbr.rel (%p1198) target = $region72
        $region71: #{tpu_custom_call.1} parent=67 // pred_region
          %s1201 = sand.u32 %s206, 1
          %s1202 = scalar_lea.sflag [#allocation4], %s1201
          %s1203 = sand.u32 %s206, 1
          %s1204 = smul.addr %s1203, 32
          %s1205 = scalar_lea.vmem [#allocation7], %s1204
          %1206 = dma.done %s1202, 512
        $region72: #{tpu_custom_call.1} parent=67 // pred_fallthru
          _
      $region68: #{tpu_custom_call.1} parent=5 // pred_fallthru
        _
    $region6: #{tpu_custom_call.1} parent=1 // loop_footer
      %s23 = sadd.s32 1, %s19
    $region7: #{tpu_custom_call.1} parent=1 // loop_footer_branch
      %18 = sbr.rel target = $region3
    $region8: #{tpu_custom_call.1} parent=1 // loop_exit
      _
    %1207 = vsyncpa [#allocation3], 1
    %s1208 = scalar_lea.sflag [#allocation3], 1
    %1209 = vsyncpa %s1208, 1
    %1210 = vsyncpa [#allocation6], 1
    %1211 = vsyncpa [#allocation4], 1
    %s1212 = scalar_lea.sflag [#allocation4], 1
    %1213 = vsyncpa %s1212, 1

</llo_original>
